<compile_context>
chip_gen: v7x
topology: tpu7x:2x2x1
jax: 0.10.0
libtpu: 0.0.40
codegen_flags: <defaults>
</compile_context>

<pallas_src>
import functools

import numpy as np
import jax
import jax.numpy as jnp
from jax import lax
from jax.experimental import pallas as pl
from jax.experimental.pallas import tpu as pltpu

D_FEATURES = 107
MSE_COLS = (0, 26, 62, 63, 64)
CE_SEGMENTS = ((1, 10), (10, 26), (27, 34), (34, 49),
               (49, 55), (55, 60), (60, 62), (65, 107))
N_SEG = len(CE_SEGMENTS)
SEG_PAD = 128          # lane-aligned width of the segment-indicator matrix
NUM_CORES = 2          # leading core-parallel grid axis (v7x: 2 TCs; harmless on 1-TC parts)
_SUBLANE = 8


def _build_constants(d=D_FEATURES):
    """Compile-time lane-pattern constants."""
    seg_ind = np.zeros((d, SEG_PAD), np.float32)        # 0/1 segment indicator
    for j, (s, e) in enumerate(CE_SEGMENTS):
        seg_ind[s:e, j] = 1.0
    mse_mask = np.zeros((1, d), np.float32)             # 1 at the 5 MSE columns
    for c in MSE_COLS:
        mse_mask[0, c] = 1.0
    ce_mask = seg_ind[:, :N_SEG].sum(axis=1).reshape(1, d).astype(np.float32)
    # pad_one: 1 for the (SEG_PAD - N_SEG) unused indicator columns so that
    # log(seg_sums + pad_one) is exactly 0 there.
    pad_one = np.zeros((1, SEG_PAD), np.float32)
    pad_one[0, N_SEG:] = 1.0
    return seg_ind, mse_mask, ce_mask, pad_one


_SEG_IND_NP, _MSE_MASK_NP, _CE_MASK_NP, _PAD_ONE_NP = _build_constants()


def _multiloss_kernel(seg_ref, msemask_ref, cemask_ref, padone_ref,
                      dec_ref, true_ref, mse_out_ref, ce_out_ref, acc_ref,
                      *, batch_size, tile_b, tiles_per_core, needs_mask):
    i = pl.program_id(1)                 # batch-tile step within this core
    last_i = pl.num_programs(1) - 1

    @pl.when(i == 0)
    def _init():
        acc_ref[0] = jnp.float32(0.0)    # mse partial sum (this core)
        acc_ref[1] = jnp.float32(0.0)    # ce partial sum (this core)

    d = dec_ref[...].astype(jnp.float32)     # (tile_b, D)
    t = true_ref[...].astype(jnp.float32)

    mse_mask = msemask_ref[...]              # (1, D)
    ce_mask = cemask_ref[...]                # (1, D)
    seg_ind = seg_ref[...]                   # (D, SEG_PAD)
    pad_one = padone_ref[...]                # (1, SEG_PAD)
    ce_sel = ce_mask > jnp.float32(0.5)

    # ---------------- MSE: per-row sum over the 5 scalar columns ----------------
    diff = d - t
    mse_row = jnp.sum(diff * diff * mse_mask, axis=-1, keepdims=True)    # (tile_b,1)

    # ---------------- cross entropy over the 8 one-hot segments -----------------
    # Single masked copy: -inf stays -inf after subtracting the finite row max,
    # so exp() still yields exact 0 off the CE columns (drops one select vs v2).
    masked = jnp.where(ce_sel, d, -jnp.inf)                              # (tile_b,D)
    m = jnp.max(masked, axis=-1, keepdims=True)                          # (tile_b,1)
    e = jnp.exp(masked - m)
    # One MXU matmul gives all 8 per-segment sums of exp(d - m); unused indicator
    # columns become exact 1s via pad_one so log() is 0 there.
    seg_sums = jnp.dot(e, seg_ind, preferred_element_type=jnp.float32) + pad_one
    # sum_j lse_j = N_SEG*m + sum_j log(seg_sum_j)
    lse_row = jnp.float32(N_SEG) * m + jnp.sum(
        jnp.log(seg_sums), axis=-1, keepdims=True)                       # (tile_b,1)
    # sum_j logits[target_j] == sum over CE columns of d * one-hot target.
    tgt_row = jnp.sum(d * t * ce_mask, axis=-1, keepdims=True)           # (tile_b,1)
    ce_row = lse_row - tgt_row

    if needs_mask:
        # Ragged / overflow tiles exist somewhere in the grid.  The validity
        # work (narrow (tile_b,1) iota + NaN-safe selects on the per-row
        # partials) only runs on the tiles that actually need it.
        tile_idx = pl.program_id(0) * tiles_per_core + i     # un-clamped tile id
        row0 = tile_idx * tile_b
        tile_is_ragged = row0 + tile_b > batch_size

        @pl.when(jnp.logical_not(tile_is_ragged))
        def _acc_full():
            acc_ref[0] = acc_ref[0] + jnp.sum(mse_row)
            acc_ref[1] = acc_ref[1] + jnp.sum(ce_row)

        @pl.when(tile_is_ragged)
        def _acc_masked():
            rows = lax.broadcasted_iota(jnp.int32, (tile_b, 1), 0) + row0
            valid = rows < batch_size
            # where() (not multiply) so NaN/Inf from stale rows cannot leak in.
            acc_ref[0] = acc_ref[0] + jnp.sum(jnp.where(valid, mse_row, 0.0))
            acc_ref[1] = acc_ref[1] + jnp.sum(jnp.where(valid, ce_row, 0.0))
    else:
        acc_ref[0] = acc_ref[0] + jnp.sum(mse_row)
        acc_ref[1] = acc_ref[1] + jnp.sum(ce_row)

    @pl.when(i == last_i)
    def _finalize():
        # Per-core partial sums, broadcast into this core's lane-dense output
        # block; the wrapper sums the per-core rows and divides by B.
        mse_out_ref[...] = jnp.full(mse_out_ref.shape, acc_ref[0], jnp.float32)
        ce_out_ref[...] = jnp.full(ce_out_ref.shape, acc_ref[1], jnp.float32)


def multi_loss(data_decoded, data_true, batch_size, *, tile_b=4096):
    """Pallas implementation of MultiLoss.forward.

    Returns (Multi_loss, [mse_Loss, ce_Loss]) as scalar jnp arrays.
    Inputs may be f32 or bf16 (bf16 preferred: halves HBM traffic; the kernel
    casts each tile to f32 after the DMA).  Targets inside each CE segment must
    be one-hot (same assumption as the reference's `.nonzero()[:, 1]`).
    """
    B, D = data_decoded.shape
    assert batch_size == B
    assert D == D_FEATURES
    assert data_true.shape == (B, D)

    # tile_b: unconditionally a multiple of 8, >= 8, no larger than padded B.
    tile_b = max(_SUBLANE,
                 ((int(tile_b) + _SUBLANE - 1) // _SUBLANE) * _SUBLANE)
    b_pad = ((B + _SUBLANE - 1) // _SUBLANE) * _SUBLANE
    tile_b = min(tile_b, b_pad)

    n_tiles = pl.cdiv(B, tile_b)
    tiles_per_core = pl.cdiv(n_tiles, NUM_CORES)
    grid = (NUM_CORES, tiles_per_core)
    covered_rows = NUM_CORES * tiles_per_core * tile_b
    needs_mask = covered_rows != B          # any ragged / overflow tiles?

    def data_map(c, i):
        # Clamp overflow tiles (second core's tail) onto the last real tile;
        # their rows are discarded in-kernel by the validity select.
        return (jnp.minimum(c * tiles_per_core + i, n_tiles - 1), 0)

    seg_ind = jnp.asarray(_SEG_IND_NP)
    mse_mask = jnp.asarray(_MSE_MASK_NP)
    ce_mask = jnp.asarray(_CE_MASK_NP)
    pad_one = jnp.asarray(_PAD_ONE_NP)

    out_shape = (jax.ShapeDtypeStruct((NUM_CORES * _SUBLANE, 128), jnp.float32),
                 jax.ShapeDtypeStruct((NUM_CORES * _SUBLANE, 128), jnp.float32))

    kernel = functools.partial(
        _multiloss_kernel, batch_size=B, tile_b=tile_b,
        tiles_per_core=tiles_per_core, needs_mask=needs_mask)

    mse_part, ce_part = pl.pallas_call(
        kernel,
        out_shape=out_shape,
        grid_spec=pltpu.PrefetchScalarGridSpec(
            num_scalar_prefetch=0,
            grid=grid,
            in_specs=[
                # grid-invariant constants (DMA'd once, kept resident)
                pl.BlockSpec((D_FEATURES, SEG_PAD), lambda c, i: (0, 0)),
                pl.BlockSpec((1, D_FEATURES), lambda c, i: (0, 0)),
                pl.BlockSpec((1, D_FEATURES), lambda c, i: (0, 0)),
                pl.BlockSpec((1, SEG_PAD), lambda c, i: (0, 0)),
                # streamed batch tiles (double-buffered by the Pallas pipeline)
                pl.BlockSpec((tile_b, D_FEATURES), data_map),
                pl.BlockSpec((tile_b, D_FEATURES), data_map),
            ],
            out_specs=[
                # one lane-dense (8,128) partial-sum block per core
                pl.BlockSpec((_SUBLANE, 128), lambda c, i: (c, 0)),
                pl.BlockSpec((_SUBLANE, 128), lambda c, i: (c, 0)),
            ],
            scratch_shapes=[pltpu.SMEM((2,), jnp.float32)],
        ),
        compiler_params=pltpu.CompilerParams(
            dimension_semantics=("parallel", "arbitrary"),
            vmem_limit_bytes=48 * 1024 * 1024),
    )(seg_ind, mse_mask, ce_mask, pad_one, data_decoded, data_true)

    inv_b = jnp.float32(1.0 / B)
    mse_total = mse_part[::_SUBLANE, 0].sum() * inv_b    # sum over per-core rows
    ce_total = ce_part[::_SUBLANE, 0].sum() * inv_b
    multi = mse_total + ce_total
    loss_item = [mse_total, ce_total]
    return multi, loss_item


def _reference_multi_loss(dec, tru):
    """Pure-JAX reference used only to sanity-check the kernel."""
    mse = 0.0
    for c in MSE_COLS:
        mse = mse + jnp.mean((dec[:, c] - tru[:, c]) ** 2)
    ce = 0.0
    for (s, e) in CE_SEGMENTS:
        logits = dec[:, s:e]
        target = jnp.argmax(tru[:, s:e], axis=1)
        lse = jax.scipy.special.logsumexp(logits, axis=1)
        ce = ce + jnp.mean(lse - jnp.take_along_axis(
            logits, target[:, None], axis=1)[:, 0])
    return mse + ce, mse, ce


def _make_inputs(key, B):
    k_dec, k_sc, k_cls = jax.random.split(key, 3)
    data_decoded = jax.random.normal(k_dec, (B, D_FEATURES), jnp.float32)
    # data_true: real-valued in the MSE columns, one-hot in each CE segment.
    data_true = jnp.zeros((B, D_FEATURES), jnp.float32)
    scalar_vals = jax.random.normal(k_sc, (B, len(MSE_COLS)), jnp.float32)
    for i, c in enumerate(MSE_COLS):
        data_true = data_true.at[:, c].set(scalar_vals[:, i])
    for idx, (s, e) in enumerate(CE_SEGMENTS):
        kk = jax.random.fold_in(k_cls, idx)
        cls = jax.random.randint(kk, (B,), 0, e - s)
        data_true = data_true.at[jnp.arange(B), s + cls].set(1.0)
    return data_decoded, data_true


def _check(B, tile_b, key):
    dec, tru = _make_inputs(key, B)
    if tile_b is None:
        multi, (mse, ce) = multi_loss(dec, tru, B)
    else:
        multi, (mse, ce) = multi_loss(dec, tru, B, tile_b=tile_b)
    jax.block_until_ready((multi, mse, ce))
    r_multi, r_mse, r_ce = _reference_multi_loss(dec, tru)
    assert jnp.allclose(multi, r_multi, rtol=1e-5, atol=1e-5), (multi, r_multi)
    assert jnp.allclose(mse, r_mse, rtol=1e-5, atol=1e-5), (mse, r_mse)
    assert jnp.allclose(ce, r_ce, rtol=1e-5, atol=1e-5), (ce, r_ce)


if __name__ == "__main__":
    key = jax.random.PRNGKey(0)

    # Tiny single-tile case (B=4 < tile_b -> ragged tile + empty tile on core 1).
    _check(4, None, jax.random.fold_in(key, 1))

    # Multi-tile case exercising the grid pipeline, the index-map clamp and the
    # ragged last tile (B=20, tile_b=8 -> 3 real tiles over a (2,2) grid).
    _check(20, 8, jax.random.fold_in(key, 2))

    # Exactly-covered case exercising the static no-masking path
    # (B=128, tile_b=32 -> 4 tiles, 2 per core, no invalid rows anywhere).
    _check(128, 32, jax.random.fold_in(key, 3))

    print("KERNEL_OK")
</pallas_src>

<mosaic_0001>
module attributes {stable_mosaic.version = 11 : i64} {
  func.func @_multiloss_kernel(%arg0: i32, %arg1: i32, %arg2: memref<107x128xf32, #tpu.memory_space<vmem>>, %arg3: memref<1x107xf32, #tpu.memory_space<vmem>>, %arg4: memref<1x107xf32, #tpu.memory_space<vmem>>, %arg5: memref<1x128xf32, #tpu.memory_space<vmem>>, %arg6: memref<8x107xf32, #tpu.memory_space<vmem>>, %arg7: memref<8x107xf32, #tpu.memory_space<vmem>>, %arg8: memref<8x128xf32, #tpu.memory_space<vmem>>, %arg9: memref<8x128xf32, #tpu.memory_space<vmem>>, %arg10: memref<2xf32, #tpu.memory_space<smem>>) attributes {dimension_semantics = [#tpu.dimension_semantics<parallel>, #tpu.dimension_semantics<arbitrary>], iteration_bounds = array<i64: 2, 1>, scalar_prefetch = 0 : i64, scratch_operands = 1 : i64, tpu.core_type = #tpu.core_type<tc>, window_params = [{pipeline_mode = #tpu.pipeline_mode<synchronous>, transform_indices = @transform_0, window_bounds = array<i64: 107, 128>}, {pipeline_mode = #tpu.pipeline_mode<synchronous>, transform_indices = @transform_1, window_bounds = array<i64: 1, 107>}, {pipeline_mode = #tpu.pipeline_mode<synchronous>, transform_indices = @transform_2, window_bounds = array<i64: 1, 107>}, {pipeline_mode = #tpu.pipeline_mode<synchronous>, transform_indices = @transform_3, window_bounds = array<i64: 1, 128>}, {transform_indices = @transform_4, window_bounds = array<i64: 8, 107>}, {transform_indices = @transform_5, window_bounds = array<i64: 8, 107>}, {transform_indices = @transform_6, window_bounds = array<i64: 8, 128>}, {transform_indices = @transform_7, window_bounds = array<i64: 8, 128>}]} {
    %c0_i32 = arith.constant 0 : i32
    %0 = arith.cmpi eq, %arg1, %c0_i32 : i32
    %1 = arith.extui %0 : i1 to i32
    %c0_i32_0 = arith.constant 0 : i32
    %2 = arith.cmpi ne, %1, %c0_i32_0 : i32
    scf.if %2 {
      %cst_24 = arith.constant 0.000000e+00 : f32
      %c0_25 = arith.constant 0 : index
      %54 = memref.load %arg10[%c0_25] : memref<2xf32, #tpu.memory_space<smem>>
      memref.store %cst_24, %arg10[%c0_25] : memref<2xf32, #tpu.memory_space<smem>>
      %cst_26 = arith.constant 0.000000e+00 : f32
      %c1 = arith.constant 1 : index
      %55 = memref.load %arg10[%c1] : memref<2xf32, #tpu.memory_space<smem>>
      memref.store %cst_26, %arg10[%c1] : memref<2xf32, #tpu.memory_space<smem>>
    } else {
    }
    %c0 = arith.constant 0 : index
    %c0_1 = arith.constant 0 : index
    %3 = vector.load %arg6[%c0, %c0_1] : memref<8x107xf32, #tpu.memory_space<vmem>>, vector<8x107xf32>
    %c0_2 = arith.constant 0 : index
    %c0_3 = arith.constant 0 : index
    %4 = vector.load %arg7[%c0_2, %c0_3] : memref<8x107xf32, #tpu.memory_space<vmem>>, vector<8x107xf32>
    %c0_4 = arith.constant 0 : index
    %c0_5 = arith.constant 0 : index
    %5 = vector.load %arg3[%c0_4, %c0_5] : memref<1x107xf32, #tpu.memory_space<vmem>>, vector<1x107xf32>
    %c0_6 = arith.constant 0 : index
    %c0_7 = arith.constant 0 : index
    %6 = vector.load %arg4[%c0_6, %c0_7] : memref<1x107xf32, #tpu.memory_space<vmem>>, vector<1x107xf32>
    %c0_8 = arith.constant 0 : index
    %c0_9 = arith.constant 0 : index
    %7 = vector.load %arg2[%c0_8, %c0_9] : memref<107x128xf32, #tpu.memory_space<vmem>>, vector<107x128xf32>
    %c0_10 = arith.constant 0 : index
    %c0_11 = arith.constant 0 : index
    %8 = vector.load %arg5[%c0_10, %c0_11] : memref<1x128xf32, #tpu.memory_space<vmem>>, vector<1x128xf32>
    %cst = arith.constant 5.000000e-01 : f32
    %9 = vector.broadcast %cst : f32 to vector<1x107xf32>
    %10 = arith.cmpf ogt, %6, %9 : vector<1x107xf32>
    %11 = arith.subf %3, %4 : vector<8x107xf32>
    %12 = arith.mulf %11, %11 : vector<8x107xf32>
    %13 = vector.broadcast %5 : vector<1x107xf32> to vector<8x107xf32>
    %14 = arith.mulf %12, %13 : vector<8x107xf32>
    %cst_12 = arith.constant dense<0.000000e+00> : vector<8xf32>
    %15 = vector.multi_reduction <add>, %14, %cst_12 [1] : vector<8x107xf32> to vector<8xf32>
    %16 = vector.shape_cast %15 : vector<8xf32> to vector<8x1xf32>
    %cst_13 = arith.constant 0xFF800000 : f32
    %17 = vector.shape_cast %10 : vector<1x107xi1> to vector<1x107xi1>
    %18 = vector.broadcast %17 : vector<1x107xi1> to vector<8x107xi1>
    %19 = vector.broadcast %cst_13 : f32 to vector<8x107xf32>
    %20 = arith.select %18, %3, %19 : vector<8x107xi1>, vector<8x107xf32>
    %cst_14 = arith.constant dense<0xFF800000> : vector<8xf32>
    %21 = vector.multi_reduction <maximumf>, %20, %cst_14 [1] : vector<8x107xf32> to vector<8xf32>
    %22 = vector.shape_cast %21 : vector<8xf32> to vector<8x1xf32>
    %23 = vector.broadcast %22 : vector<8x1xf32> to vector<8x107xf32>
    %24 = arith.subf %20, %23 : vector<8x107xf32>
    %25 = math.exp %24 : vector<8x107xf32>
    %cst_15 = arith.constant dense<0.000000e+00> : vector<8x128xf32>
    %26 = tpu.matmul %25, %7, %cst_15 {dimension_numbers = #tpu.dot_dimension_numbers<[1], [0], [0], [1], [0, 0, 1, 1], [], []>} : vector<8x107xf32>, vector<107x128xf32>, vector<8x128xf32> -> vector<8x128xf32>
    %27 = vector.broadcast %8 : vector<1x128xf32> to vector<8x128xf32>
    %28 = arith.addf %26, %27 : vector<8x128xf32>
    %cst_16 = arith.constant 8.000000e+00 : f32
    %29 = vector.broadcast %cst_16 : f32 to vector<8x1xf32>
    %30 = arith.mulf %29, %22 : vector<8x1xf32>
    %31 = math.log %28 : vector<8x128xf32>
    %cst_17 = arith.constant dense<0.000000e+00> : vector<8xf32>
    %32 = vector.multi_reduction <add>, %31, %cst_17 [1] : vector<8x128xf32> to vector<8xf32>
    %33 = vector.shape_cast %32 : vector<8xf32> to vector<8x1xf32>
    %34 = arith.addf %30, %33 : vector<8x1xf32>
    %35 = arith.mulf %3, %4 : vector<8x107xf32>
    %36 = vector.broadcast %6 : vector<1x107xf32> to vector<8x107xf32>
    %37 = arith.mulf %35, %36 : vector<8x107xf32>
    %cst_18 = arith.constant dense<0.000000e+00> : vector<8xf32>
    %38 = vector.multi_reduction <add>, %37, %cst_18 [1] : vector<8x107xf32> to vector<8xf32>
    %39 = vector.shape_cast %38 : vector<8xf32> to vector<8x1xf32>
    %40 = arith.subf %34, %39 : vector<8x1xf32>
    %c1_i32 = arith.constant 1 : i32
    %41 = arith.muli %arg0, %c1_i32 : i32
    %42 = arith.addi %41, %arg1 : i32
    %c8_i32 = arith.constant 8 : i32
    %43 = arith.muli %42, %c8_i32 : i32
    %c8_i32_19 = arith.constant 8 : i32
    %44 = arith.addi %43, %c8_i32_19 : i32
    %c4_i32 = arith.constant 4 : i32
    %45 = arith.cmpi sgt, %44, %c4_i32 : i32
    %true = arith.constant true
    %46 = arith.xori %45, %true : i1
    %47 = arith.extui %46 : i1 to i32
    %c0_i32_20 = arith.constant 0 : i32
    %48 = arith.cmpi ne, %47, %c0_i32_20 : i32
    scf.if %48 {
      %c0_24 = arith.constant 0 : index
      %54 = memref.load %arg10[%c0_24] : memref<2xf32, #tpu.memory_space<smem>>
      %55 = vector.shape_cast %16 : vector<8x1xf32> to vector<1x8x1xf32>
      %cst_25 = arith.constant dense<0.000000e+00> : vector<1xf32>
      %56 = vector.multi_reduction <add>, %55, %cst_25 [1, 2] : vector<1x8x1xf32> to vector<1xf32>
      %57 = vector.shape_cast %56 : vector<1xf32> to vector<1x1x1xf32>
      %58 = vector.extract %57[0, 0, 0] : f32 from vector<1x1x1xf32>
      %59 = arith.addf %54, %58 : f32
      %c0_26 = arith.constant 0 : index
      %60 = memref.load %arg10[%c0_26] : memref<2xf32, #tpu.memory_space<smem>>
      memref.store %59, %arg10[%c0_26] : memref<2xf32, #tpu.memory_space<smem>>
      %c1 = arith.constant 1 : index
      %61 = memref.load %arg10[%c1] : memref<2xf32, #tpu.memory_space<smem>>
      %62 = vector.shape_cast %40 : vector<8x1xf32> to vector<1x8x1xf32>
      %cst_27 = arith.constant dense<0.000000e+00> : vector<1xf32>
      %63 = vector.multi_reduction <add>, %62, %cst_27 [1, 2] : vector<1x8x1xf32> to vector<1xf32>
      %64 = vector.shape_cast %63 : vector<1xf32> to vector<1x1x1xf32>
      %65 = vector.extract %64[0, 0, 0] : f32 from vector<1x1x1xf32>
      %66 = arith.addf %61, %65 : f32
      %c1_28 = arith.constant 1 : index
      %67 = memref.load %arg10[%c1_28] : memref<2xf32, #tpu.memory_space<smem>>
      memref.store %66, %arg10[%c1_28] : memref<2xf32, #tpu.memory_space<smem>>
    } else {
    }
    %49 = arith.extui %45 : i1 to i32
    %c0_i32_21 = arith.constant 0 : i32
    %50 = arith.cmpi ne, %49, %c0_i32_21 : i32
    scf.if %50 {
      %54 = tpu.iota {dimensions = array<i32: 0>} : vector<8x1xi32>
      %55 = vector.broadcast %43 : i32 to vector<8x1xi32>
      %56 = arith.addi %54, %55 : vector<8x1xi32>
      %c4_i32_24 = arith.constant 4 : i32
      %57 = vector.broadcast %c4_i32_24 : i32 to vector<8x1xi32>
      %58 = arith.cmpi slt, %56, %57 : vector<8x1xi32>
      %c0_25 = arith.constant 0 : index
      %59 = memref.load %arg10[%c0_25] : memref<2xf32, #tpu.memory_space<smem>>
      %cst_26 = arith.constant 0.000000e+00 : f32
      %60 = vector.broadcast %cst_26 : f32 to vector<8x1xf32>
      %61 = arith.select %58, %16, %60 : vector<8x1xi1>, vector<8x1xf32>
      %62 = vector.shape_cast %61 : vector<8x1xf32> to vector<1x8x1xf32>
      %cst_27 = arith.constant dense<0.000000e+00> : vector<1xf32>
      %63 = vector.multi_reduction <add>, %62, %cst_27 [1, 2] : vector<1x8x1xf32> to vector<1xf32>
      %64 = vector.shape_cast %63 : vector<1xf32> to vector<1x1x1xf32>
      %65 = vector.extract %64[0, 0, 0] : f32 from vector<1x1x1xf32>
      %66 = arith.addf %59, %65 : f32
      %c0_28 = arith.constant 0 : index
      %67 = memref.load %arg10[%c0_28] : memref<2xf32, #tpu.memory_space<smem>>
      memref.store %66, %arg10[%c0_28] : memref<2xf32, #tpu.memory_space<smem>>
      %c1 = arith.constant 1 : index
      %68 = memref.load %arg10[%c1] : memref<2xf32, #tpu.memory_space<smem>>
      %cst_29 = arith.constant 0.000000e+00 : f32
      %69 = vector.broadcast %cst_29 : f32 to vector<8x1xf32>
      %70 = arith.select %58, %40, %69 : vector<8x1xi1>, vector<8x1xf32>
      %71 = vector.shape_cast %70 : vector<8x1xf32> to vector<1x8x1xf32>
      %cst_30 = arith.constant dense<0.000000e+00> : vector<1xf32>
      %72 = vector.multi_reduction <add>, %71, %cst_30 [1, 2] : vector<1x8x1xf32> to vector<1xf32>
      %73 = vector.shape_cast %72 : vector<1xf32> to vector<1x1x1xf32>
      %74 = vector.extract %73[0, 0, 0] : f32 from vector<1x1x1xf32>
      %75 = arith.addf %68, %74 : f32
      %c1_31 = arith.constant 1 : index
      %76 = memref.load %arg10[%c1_31] : memref<2xf32, #tpu.memory_space<smem>>
      memref.store %75, %arg10[%c1_31] : memref<2xf32, #tpu.memory_space<smem>>
    } else {
    }
    %c0_i32_22 = arith.constant 0 : i32
    %51 = arith.cmpi eq, %arg1, %c0_i32_22 : i32
    %52 = arith.extui %51 : i1 to i32
    %c0_i32_23 = arith.constant 0 : i32
    %53 = arith.cmpi ne, %52, %c0_i32_23 : i32
    scf.if %53 {
      %c0_24 = arith.constant 0 : index
      %54 = memref.load %arg10[%c0_24] : memref<2xf32, #tpu.memory_space<smem>>
      %55 = vector.broadcast %54 : f32 to vector<8x128xf32>
      %c0_25 = arith.constant 0 : index
      %c0_26 = arith.constant 0 : index
      %56 = vector.load %arg8[%c0_25, %c0_26] : memref<8x128xf32, #tpu.memory_space<vmem>>, vector<8x128xf32>
      tpu.vector_store %arg8[%c0_25, %c0_26], %55 {strides = array<i32>} : memref<8x128xf32, #tpu.memory_space<vmem>>, vector<8x128xf32>,
      %c1 = arith.constant 1 : index
      %57 = memref.load %arg10[%c1] : memref<2xf32, #tpu.memory_space<smem>>
      %58 = vector.broadcast %57 : f32 to vector<8x128xf32>
      %c0_27 = arith.constant 0 : index
      %c0_28 = arith.constant 0 : index
      %59 = vector.load %arg9[%c0_27, %c0_28] : memref<8x128xf32, #tpu.memory_space<vmem>>, vector<8x128xf32>
      tpu.vector_store %arg9[%c0_27, %c0_28], %58 {strides = array<i32>} : memref<8x128xf32, #tpu.memory_space<vmem>>, vector<8x128xf32>,
    } else {
    }
    return
  }
  func.func @transform_0(%arg0: i32, %arg1: i32) -> (i32, i32) {
    %c0_i32 = arith.constant 0 : i32
    %c0_i32_0 = arith.constant 0 : i32
    %c0_i32_1 = arith.constant 0 : i32
    return %c0_i32, %c0_i32_0 : i32, i32
  }
  func.func @transform_1(%arg0: i32, %arg1: i32) -> (i32, i32) {
    %c0_i32 = arith.constant 0 : i32
    %c0_i32_0 = arith.constant 0 : i32
    %c0_i32_1 = arith.constant 0 : i32
    return %c0_i32, %c0_i32_0 : i32, i32
  }
  func.func @transform_2(%arg0: i32, %arg1: i32) -> (i32, i32) {
    %c0_i32 = arith.constant 0 : i32
    %c0_i32_0 = arith.constant 0 : i32
    %c0_i32_1 = arith.constant 0 : i32
    return %c0_i32, %c0_i32_0 : i32, i32
  }
  func.func @transform_3(%arg0: i32, %arg1: i32) -> (i32, i32) {
    %c0_i32 = arith.constant 0 : i32
    %c0_i32_0 = arith.constant 0 : i32
    %c0_i32_1 = arith.constant 0 : i32
    return %c0_i32, %c0_i32_0 : i32, i32
  }
  func.func @transform_4(%arg0: i32, %arg1: i32) -> (i32, i32) {
    %c1_i32 = arith.constant 1 : i32
    %0 = arith.muli %arg0, %c1_i32 : i32
    %1 = arith.addi %0, %arg1 : i32
    %c0_i32 = arith.constant 0 : i32
    %2 = arith.minsi %1, %c0_i32 : i32
    %c0_i32_0 = arith.constant 0 : i32
    %c0_i32_1 = arith.constant 0 : i32
    return %2, %c0_i32_0 : i32, i32
  }
  func.func @transform_5(%arg0: i32, %arg1: i32) -> (i32, i32) {
    %c1_i32 = arith.constant 1 : i32
    %0 = arith.muli %arg0, %c1_i32 : i32
    %1 = arith.addi %0, %arg1 : i32
    %c0_i32 = arith.constant 0 : i32
    %2 = arith.minsi %1, %c0_i32 : i32
    %c0_i32_0 = arith.constant 0 : i32
    %c0_i32_1 = arith.constant 0 : i32
    return %2, %c0_i32_0 : i32, i32
  }
  func.func @transform_6(%arg0: i32, %arg1: i32) -> (i32, i32) {
    %c0_i32 = arith.constant 0 : i32
    %c0_i32_0 = arith.constant 0 : i32
    return %arg0, %c0_i32 : i32, i32
  }
  func.func @transform_7(%arg0: i32, %arg1: i32) -> (i32, i32) {
    %c0_i32 = arith.constant 0 : i32
    %c0_i32_0 = arith.constant 0 : i32
    return %arg0, %c0_i32 : i32, i32
  }
}

</mosaic_0001>

<llo_original>
// kernel: tpu_custom_call.1
$region0: #{tpu_custom_call.1}
  #allocation0 [shape = 'u32[]', space=smem, size = 0x4, offset = 0x4, fixed_abs, tag = 'smem constant byte address 0x4 - core index']
  #allocation1 [shape = 'u32[144,128]{1,0:T(1,128)}', space=vmem, size = 0x12000, scoped, tag = 'internal scratch']
  #allocation2 [shape = 'f32[2]{0:T(128)}', space=smem, size = 0x200, scoped, tag = 'scratch operand']
  %s0 = inlined_call_operand.hbm [shape: f32[107,128], index: 0, kind: input, shape index: {}]
  %s1 = inlined_call_operand.vmem [shape: f32[1,107], index: 1, kind: input, shape index: {}]
  %s2 = inlined_call_operand.vmem [shape: f32[1,107], index: 2, kind: input, shape index: {}]
  %s3 = inlined_call_operand.vmem [shape: f32[1,128], index: 3, kind: input, shape index: {}]
  %s4 = inlined_call_operand.vmem [shape: f32[4,107], index: 4, kind: input, shape index: {}]
  %s5 = inlined_call_operand.vmem [shape: f32[4,107], index: 5, kind: input, shape index: {}]
  %s6 = inlined_call_operand.hbm [shape: f32[16,128], index: 6, kind: output, shape index: {0}]
  %s7 = inlined_call_operand.hbm [shape: f32[16,128], index: 7, kind: output, shape index: {1}]
  %8 = xla_tuple %s6, %s7
  %s9 = sld [smem:[#allocation0]]
  $region85: #{tpu_custom_call.1} parent=0
    _
  %s11 = ssub.s32 1, %s9
  %s12 = scalar_select 0, %s11, %s9
  $region1: #{tpu_custom_call.1} parent=0
    #allocation3 [shape = 'u8[57344]{0}', space=vmem, size = 0xe000, scoped, tag = 'input window, operand 0, single buffered']
    #allocation4 [shape = 's32[2]{0}', space=sflag, size = 0x8, scoped, tag = 'scoped memory for tpu_custom_call.1']
    #allocation5 [shape = 's32[2]{0}', space=sflag, size = 0x8, scoped, tag = 'scoped memory for tpu_custom_call.1']
    #allocation6 [shape = 'u8[8192]{0}', space=vmem, size = 0x2000, scoped, tag = 'output window, operand 0']
    #allocation7 [shape = 'u8[8192]{0}', space=vmem, size = 0x2000, scoped, tag = 'output window, operand 1']
    #allocation8 [shape = 's32[2]{0}', space=sflag, size = 0x8, scoped, tag = 'scoped memory for tpu_custom_call.1']
    %13 = vsyncpa [#allocation4], 0
    %14 = vsyncpa [#allocation5], 0
    %s15 = scalar_lea.sflag [#allocation5], 1
    %16 = vsyncpa %s15, 0
    %17 = vsyncpa [#allocation8], 0
    %s18 = scalar_lea.sflag [#allocation8], 1
    %19 = vsyncpa %s18, 0
    loop: start=0, step=1, limit=4
    $region2: #{tpu_custom_call.1} parent=1 // loop_pre_header
      _
    $region3: #{tpu_custom_call.1} parent=1 // loop_header
      %s21 = sphi 0, %s25
      %p22 = scmp.ge.s32.totalorder %s21, 4
      %s28 = sphi 0, %s40
      %s29 = sphi 0, %s36
      %s30 = sphi 0, %s28
      %s31 = sphi 0, %s29
      %s32 = sphi 0, %s30
      %s33 = sphi 0, %s31
      %s41 = sphi 0, %s41
      %s43 = sphi 0, %s41
      %s44 = sphi 0, %s43
      %s58 = sphi 0, %s44
      %s62 = sphi 0, %s62
      %s64 = sphi 0, %s62
      %s65 = sphi 0, %s64
      %s79 = sphi 0, %s65
      %s83 = sphi 0, %s83
      %s85 = sphi 0, %s83
      %s86 = sphi 0, %s85
      %s100 = sphi 0, %s86
      %s104 = sphi 0, %s104
      %s106 = sphi 0, %s104
      %s107 = sphi 0, %s106
      %s121 = sphi 0, %s107
      %s133 = sphi 0, %s135
      %s136 = sphi 0, %s133
      %s137 = sphi 0, %s136
      %s153 = sphi 0, %s137
      %s165 = sphi 0, %s167
      %s168 = sphi 0, %s165
      %s169 = sphi 0, %s168
      %s185 = sphi 0, %s169
      %s191 = sphi 0, %s193
      %s194 = sphi 0, %s191
      %s195 = sphi 0, %s194
      %s211 = sphi 0, %s195
      %s217 = sphi 0, %s219
      %s220 = sphi 0, %s217
      %s221 = sphi 0, %s220
      %s237 = sphi 0, %s221
    $region4: #{tpu_custom_call.1} parent=1 // loop_header_branch
      %24 = sbr.rel (%p22) target = $region8
    $region5: #{tpu_custom_call.1} parent=1 // loop_body
      %s26 = ssub.s32 %s21, 1
      %s27 = ssub.s32 %s21, 2
      %s34 = sadd.s32 1, %s29
      %p35 = scmp.ge.s32.totalorder %s34, 1
      %s36 = scalar_select %p35, 0, %s34
      %s37 = sadd.s32 1, %s28
      %s38 = scalar_select %p35, %s37, %s28
      %p39 = scmp.ge.s32.totalorder %s38, 2
      %s40 = scalar_select %p39, 0, %s38
      %s42 = sadd.s32 %s41, 1
      %p45 = scmp.eq.s32.totalorder %s21, 1
      %p46 = scmp.ne.s32.totalorder %s41, %s43
      %p47 = scmp.eq.s32.totalorder %s21, 0
      %p48 = por %p46, %p47
      %p49 = scmp.ne.s32.totalorder %s41, %s43
      %p50 = scmp.eq.s32.totalorder %s26, 1
      %p51 = por %p49, %p50
      %p52 = scmp.ne.s32.totalorder %s43, %s44
      %p53 = scmp.eq.s32.totalorder %s26, 0
      %p54 = por %p52, %p53
      %p55 = scmp.ne.s32.totalorder %s43, %s44
      %p56 = scmp.eq.s32.totalorder %s27, 1
      %p57 = por %p55, %p56
      %p59 = scmp.ne.s32.totalorder %s44, %s58
      %p60 = scmp.eq.s32.totalorder %s27, 0
      %p61 = por %p59, %p60
      %s63 = sadd.s32 %s62, 1
      %p66 = scmp.eq.s32.totalorder %s21, 1
      %p67 = scmp.ne.s32.totalorder %s62, %s64
      %p68 = scmp.eq.s32.totalorder %s21, 0
      %p69 = por %p67, %p68
      %p70 = scmp.ne.s32.totalorder %s62, %s64
      %p71 = scmp.eq.s32.totalorder %s26, 1
      %p72 = por %p70, %p71
      %p73 = scmp.ne.s32.totalorder %s64, %s65
      %p74 = scmp.eq.s32.totalorder %s26, 0
      %p75 = por %p73, %p74
      %p76 = scmp.ne.s32.totalorder %s64, %s65
      %p77 = scmp.eq.s32.totalorder %s27, 1
      %p78 = por %p76, %p77
      %p80 = scmp.ne.s32.totalorder %s65, %s79
      %p81 = scmp.eq.s32.totalorder %s27, 0
      %p82 = por %p80, %p81
      %s84 = sadd.s32 %s83, 1
      %p87 = scmp.eq.s32.totalorder %s21, 1
      %p88 = scmp.ne.s32.totalorder %s83, %s85
      %p89 = scmp.eq.s32.totalorder %s21, 0
      %p90 = por %p88, %p89
      %p91 = scmp.ne.s32.totalorder %s83, %s85
      %p92 = scmp.eq.s32.totalorder %s26, 1
      %p93 = por %p91, %p92
      %p94 = scmp.ne.s32.totalorder %s85, %s86
      %p95 = scmp.eq.s32.totalorder %s26, 0
      %p96 = por %p94, %p95
      %p97 = scmp.ne.s32.totalorder %s85, %s86
      %p98 = scmp.eq.s32.totalorder %s27, 1
      %p99 = por %p97, %p98
      %p101 = scmp.ne.s32.totalorder %s86, %s100
      %p102 = scmp.eq.s32.totalorder %s27, 0
      %p103 = por %p101, %p102
      %s105 = sadd.s32 %s104, 1
      %p108 = scmp.eq.s32.totalorder %s21, 1
      %p109 = scmp.ne.s32.totalorder %s104, %s106
      %p110 = scmp.eq.s32.totalorder %s21, 0
      %p111 = por %p109, %p110
      %p112 = scmp.ne.s32.totalorder %s104, %s106
      %p113 = scmp.eq.s32.totalorder %s26, 1
      %p114 = por %p112, %p113
      %p115 = scmp.ne.s32.totalorder %s106, %s107
      %p116 = scmp.eq.s32.totalorder %s26, 0
      %p117 = por %p115, %p116
      %p118 = scmp.ne.s32.totalorder %s106, %s107
      %p119 = scmp.eq.s32.totalorder %s27, 1
      %p120 = por %p118, %p119
      %p122 = scmp.ne.s32.totalorder %s107, %s121
      %p123 = scmp.eq.s32.totalorder %s27, 0
      %p124 = por %p122, %p123
      %s125 = sadd.s32 %s28, %s29
      %p126 = scmp.lt.s32.totalorder %s125, 0
      %s127 = scalar_select %p126, %s125, 0
      %s128 = sadd.s32 %s40, %s36
      %p129 = scmp.lt.s32.totalorder %s128, 0
      %s130 = scalar_select %p129, %s128, 0
      %s131 = ssub.s32 %s127, %s130
      %p132 = scmp.eq.s32.totalorder %s131, 0
      %s134 = sadd.s32 %s133, 1
      %s135 = scalar_select %p132, %s133, %s134
      %p138 = pneg %p132
      %p139 = scmp.eq.s32.totalorder %s21, 1
      %p140 = por %p138, %p139
      %p141 = scmp.ne.s32.totalorder %s133, %s136
      %p142 = scmp.eq.s32.totalorder %s21, 0
      %p143 = por %p141, %p142
      %p144 = scmp.ne.s32.totalorder %s133, %s136
      %p145 = scmp.eq.s32.totalorder %s26, 1
      %p146 = por %p144, %p145
      %p147 = scmp.ne.s32.totalorder %s136, %s137
      %p148 = scmp.eq.s32.totalorder %s26, 0
      %p149 = por %p147, %p148
      %p150 = scmp.ne.s32.totalorder %s136, %s137
      %p151 = scmp.eq.s32.totalorder %s27, 1
      %p152 = por %p150, %p151
      %p154 = scmp.ne.s32.totalorder %s137, %s153
      %p155 = scmp.eq.s32.totalorder %s27, 0
      %p156 = por %p154, %p155
      %s157 = sadd.s32 %s28, %s29
      %p158 = scmp.lt.s32.totalorder %s157, 0
      %s159 = scalar_select %p158, %s157, 0
      %s160 = sadd.s32 %s40, %s36
      %p161 = scmp.lt.s32.totalorder %s160, 0
      %s162 = scalar_select %p161, %s160, 0
      %s163 = ssub.s32 %s159, %s162
      %p164 = scmp.eq.s32.totalorder %s163, 0
      %s166 = sadd.s32 %s165, 1
      %s167 = scalar_select %p164, %s165, %s166
      %p170 = pneg %p164
      %p171 = scmp.eq.s32.totalorder %s21, 1
      %p172 = por %p170, %p171
      %p173 = scmp.ne.s32.totalorder %s165, %s168
      %p174 = scmp.eq.s32.totalorder %s21, 0
      %p175 = por %p173, %p174
      %p176 = scmp.ne.s32.totalorder %s165, %s168
      %p177 = scmp.eq.s32.totalorder %s26, 1
      %p178 = por %p176, %p177
      %p179 = scmp.ne.s32.totalorder %s168, %s169
      %p180 = scmp.eq.s32.totalorder %s26, 0
      %p181 = por %p179, %p180
      %p182 = scmp.ne.s32.totalorder %s168, %s169
      %p183 = scmp.eq.s32.totalorder %s27, 1
      %p184 = por %p182, %p183
      %p186 = scmp.ne.s32.totalorder %s169, %s185
      %p187 = scmp.eq.s32.totalorder %s27, 0
      %p188 = por %p186, %p187
      %s189 = ssub.s32 %s28, %s40
      %p190 = scmp.eq.s32.totalorder %s189, 0
      %s192 = sadd.s32 %s191, 1
      %s193 = scalar_select %p190, %s191, %s192
      %p196 = pneg %p190
      %p197 = scmp.eq.s32.totalorder %s21, 1
      %p198 = por %p196, %p197
      %p199 = scmp.ne.s32.totalorder %s191, %s194
      %p200 = scmp.eq.s32.totalorder %s21, 0
      %p201 = por %p199, %p200
      %p202 = scmp.ne.s32.totalorder %s191, %s194
      %p203 = scmp.eq.s32.totalorder %s26, 1
      %p204 = por %p202, %p203
      %p205 = scmp.ne.s32.totalorder %s194, %s195
      %p206 = scmp.eq.s32.totalorder %s26, 0
      %p207 = por %p205, %p206
      %p208 = scmp.ne.s32.totalorder %s194, %s195
      %p209 = scmp.eq.s32.totalorder %s27, 1
      %p210 = por %p208, %p209
      %p212 = scmp.ne.s32.totalorder %s195, %s211
      %p213 = scmp.eq.s32.totalorder %s27, 0
      %p214 = por %p212, %p213
      %s215 = ssub.s32 %s28, %s40
      %p216 = scmp.eq.s32.totalorder %s215, 0
      %s218 = sadd.s32 %s217, 1
      %s219 = scalar_select %p216, %s217, %s218
      %p222 = pneg %p216
      %p223 = scmp.eq.s32.totalorder %s21, 1
      %p224 = por %p222, %p223
      %p225 = scmp.ne.s32.totalorder %s217, %s220
      %p226 = scmp.eq.s32.totalorder %s21, 0
      %p227 = por %p225, %p226
      %p228 = scmp.ne.s32.totalorder %s217, %s220
      %p229 = scmp.eq.s32.totalorder %s26, 1
      %p230 = por %p228, %p229
      %p231 = scmp.ne.s32.totalorder %s220, %s221
      %p232 = scmp.eq.s32.totalorder %s26, 0
      %p233 = por %p231, %p232
      %p234 = scmp.ne.s32.totalorder %s220, %s221
      %p235 = scmp.eq.s32.totalorder %s27, 1
      %p236 = por %p234, %p235
      %p238 = scmp.ne.s32.totalorder %s221, %s237
      %p239 = scmp.eq.s32.totalorder %s27, 0
      %p240 = por %p238, %p239
      %p241 = scmp.le.s32.totalorder 1, %s21
      %p242 = scmp.lt.s32.totalorder %s21, 3
      %p243 = pnand %p241, %p242
      %p244 = pneg %p243
      // Predicated region
      $region9: #{tpu_custom_call.1} parent=5 // pred_check
        _
      $region10: #{tpu_custom_call.1} parent=5 // pred_check_branch
        %246 = sbr.rel (%p243) target = $region12
      $region11: #{tpu_custom_call.1} parent=5 // pred_region
        %s247 = ssub.s32 %s21, 1
        // Predicated region
        $region13: #{tpu_custom_call.1} parent=11 // pred_check
          %p248 = pneg %p54
        $region14: #{tpu_custom_call.1} parent=11 // pred_check_branch
          %250 = sbr.rel (%p248) target = $region16
        $region15: #{tpu_custom_call.1} parent=11 // pred_region
          %s252 = ssub.s32 1792, 1792
          %253 = vsyncadd [#allocation4], %s252
          %s254 = sshll.u32 [#allocation3], 4
          %s255 = int_to_ptr.vmem [resolvable:$true] %s254
          %260 = dma.hbm_to_vmem [thread:$0]  %s0, 1792, %s255, [#allocation4], 128, 128, 8
        $region16: #{tpu_custom_call.1} parent=11 // pred_fallthru
          _
        // Predicated region
        $region17: #{tpu_custom_call.1} parent=11 // pred_check
          %p261 = pneg %p75
        $region18: #{tpu_custom_call.1} parent=11 // pred_check_branch
          %263 = sbr.rel (%p261) target = $region20
        $region19: #{tpu_custom_call.1} parent=11 // pred_region
          _
        $region20: #{tpu_custom_call.1} parent=11 // pred_fallthru
          _
        // Predicated region
        $region21: #{tpu_custom_call.1} parent=11 // pred_check
          %p264 = pneg %p96
        $region22: #{tpu_custom_call.1} parent=11 // pred_check_branch
          %266 = sbr.rel (%p264) target = $region24
        $region23: #{tpu_custom_call.1} parent=11 // pred_region
          _
        $region24: #{tpu_custom_call.1} parent=11 // pred_fallthru
          _
        // Predicated region
        $region25: #{tpu_custom_call.1} parent=11 // pred_check
          %p267 = pneg %p117
        $region26: #{tpu_custom_call.1} parent=11 // pred_check_branch
          %269 = sbr.rel (%p267) target = $region28
        $region27: #{tpu_custom_call.1} parent=11 // pred_region
          _
        $region28: #{tpu_custom_call.1} parent=11 // pred_fallthru
          _
      $region12: #{tpu_custom_call.1} parent=5 // pred_fallthru
        _
      %p270 = scmp.lt.s32.totalorder %s21, 2
      // Predicated region
      $region29: #{tpu_custom_call.1} parent=5 // pred_check
        %p271 = pneg %p270
      $region30: #{tpu_custom_call.1} parent=5 // pred_check_branch
        %273 = sbr.rel (%p271) target = $region32
      $region31: #{tpu_custom_call.1} parent=5 // pred_region
        // Predicated region
        $region33: #{tpu_custom_call.1} parent=31 // pred_check
          %p274 = pneg %p143
        $region34: #{tpu_custom_call.1} parent=31 // pred_check_branch
          %276 = sbr.rel (%p274) target = $region36
        $region35: #{tpu_custom_call.1} parent=31 // pred_region
          %s277 = sadd.s32 %s28, %s29
          %p278 = scmp.lt.s32.totalorder %s277, 0
          %s279 = scalar_select %p278, %s277, 0
          %s280 = smul.u32 2, %s279
          %s281 = ssub.s32 1, %s280
          %s282 = smul.u32 64, %s281
          %p283 = scmp.lt.s32.totalorder %s280, 0
          %s284 = scalar_select %p283, %s280, 0
          %s285 = smul.addr %s284, 4
          %s286 = scalar_lea.vmem %s4, %s285
          %s287 = sadd.s32 %s28, %s29
          %p288 = scmp.lt.s32.totalorder %s287, 0
          %s289 = scalar_select %p288, %s287, 0
          %s290 = smul.u32 2, %s289
          %s291 = ssub.s32 1, %s290
          %s292 = smul.u32 64, %s291
        $region36: #{tpu_custom_call.1} parent=31 // pred_fallthru
          _
        // Predicated region
        $region37: #{tpu_custom_call.1} parent=31 // pred_check
          %p293 = pneg %p175
        $region38: #{tpu_custom_call.1} parent=31 // pred_check_branch
          %295 = sbr.rel (%p293) target = $region40
        $region39: #{tpu_custom_call.1} parent=31 // pred_region
          %s296 = sadd.s32 %s28, %s29
          %p297 = scmp.lt.s32.totalorder %s296, 0
          %s298 = scalar_select %p297, %s296, 0
          %s299 = smul.u32 2, %s298
          %s300 = ssub.s32 1, %s299
          %s301 = smul.u32 64, %s300
          %p302 = scmp.lt.s32.totalorder %s299, 0
          %s303 = scalar_select %p302, %s299, 0
          %s304 = smul.addr %s303, 4
          %s305 = scalar_lea.vmem %s5, %s304
          %s306 = sadd.s32 %s28, %s29
          %p307 = scmp.lt.s32.totalorder %s306, 0
          %s308 = scalar_select %p307, %s306, 0
          %s309 = smul.u32 2, %s308
          %s310 = ssub.s32 1, %s309
          %s311 = smul.u32 64, %s310
        $region40: #{tpu_custom_call.1} parent=31 // pred_fallthru
          _
      $region32: #{tpu_custom_call.1} parent=5 // pred_fallthru
        _
      %p312 = scmp.le.s32.totalorder 1, %s21
      %p313 = scmp.lt.s32.totalorder %s21, 3
      %p314 = pnand %p312, %p313
      %p315 = pneg %p314
      // Predicated region
      $region41: #{tpu_custom_call.1} parent=5 // pred_check
        _
      $region42: #{tpu_custom_call.1} parent=5 // pred_check_branch
        %317 = sbr.rel (%p314) target = $region44
      $region43: #{tpu_custom_call.1} parent=5 // pred_region
        %s318 = ssub.s32 %s21, 1
        // Predicated region
        $region45: #{tpu_custom_call.1} parent=43 // pred_check
          %p319 = pneg %p54
        $region46: #{tpu_custom_call.1} parent=43 // pred_check_branch
          %321 = sbr.rel (%p319) target = $region48
        $region47: #{tpu_custom_call.1} parent=43 // pred_region
          %322 = dma.done [#allocation4], 1792
        $region48: #{tpu_custom_call.1} parent=43 // pred_fallthru
          _
        %p323 = pneg %p54
        %p324 = pneg %p51
        %p325 = pneg %p75
        %p326 = pneg %p72
        %p327 = pneg %p96
        %p328 = pneg %p93
        %p329 = pneg %p117
        %p330 = pneg %p114
        %s331 = sadd.s32 %s30, %s31
        %p332 = scmp.lt.s32.totalorder %s331, 0
        %s333 = scalar_select %p332, %s331, 0
        %s334 = smul.u32 2, %s333
        %s335 = ssub.s32 1, %s334
        %s336 = smul.u32 64, %s335
        %p337 = scmp.lt.s32.totalorder %s334, 0
        %s338 = scalar_select %p337, %s334, 0
        %s339 = smul.addr %s338, 4
        %s340 = scalar_lea.vmem %s4, %s339
        %p341 = pneg %p149
        %p342 = pneg %p146
        %s343 = sadd.s32 %s30, %s31
        %p344 = scmp.lt.s32.totalorder %s343, 0
        %s345 = scalar_select %p344, %s343, 0
        %s346 = smul.u32 2, %s345
        %s347 = ssub.s32 1, %s346
        %s348 = smul.u32 64, %s347
        %p349 = scmp.lt.s32.totalorder %s346, 0
        %s350 = scalar_select %p349, %s346, 0
        %s351 = smul.addr %s350, 4
        %s352 = scalar_lea.vmem %s5, %s351
        %p353 = pneg %p181
        %p354 = pneg %p178
        %p355 = pneg %p207
        %p356 = pneg %p204
        %s357 = sand.u32 %s194, 1
        %s358 = scalar_lea.sflag [#allocation5], %s357
        %s359 = sand.u32 %s194, 1
        %s360 = smul.addr %s359, 8
        %s361 = scalar_lea.vmem [#allocation6], %s360
        %p362 = pneg %p233
        %p363 = pneg %p230
        %s364 = sand.u32 %s220, 1
        %s365 = scalar_lea.sflag [#allocation8], %s364
        %s366 = sand.u32 %s220, 1
        %s367 = smul.addr %s366, 8
        %s368 = scalar_lea.vmem [#allocation7], %s367
        %s369 = sadd.s32 %s30, %s31
        %p370 = scmp.lt.s32.totalorder %s369, 0
        %s371 = scalar_select %p370, %s369, 0
        %s372 = smul.u32 2, %s371
        %s373 = ssub.s32 1, %s372
        %s374 = smul.u32 64, %s373
        %p375 = scmp.lt.s32.totalorder %s372, 0
        %s376 = scalar_select %p375, %s372, 0
        %s377 = smul.addr %s376, 4
        %s378 = scalar_lea.vmem %s4, %s377
        %s379 = sadd.s32 %s30, %s31
        %p380 = scmp.lt.s32.totalorder %s379, 0
        %s381 = scalar_select %p380, %s379, 0
        %s382 = smul.u32 2, %s381
        %s383 = ssub.s32 1, %s382
        %s384 = smul.u32 64, %s383
        %s385 = sadd.s32 %s30, %s31
        %p386 = scmp.lt.s32.totalorder %s385, 0
        %s387 = scalar_select %p386, %s385, 0
        %s388 = smul.u32 2, %s387
        %s389 = ssub.s32 1, %s388
        %s390 = smul.u32 64, %s389
        %p391 = scmp.lt.s32.totalorder %s388, 0
        %s392 = scalar_select %p391, %s388, 0
        %s393 = smul.addr %s392, 4
        %s394 = scalar_lea.vmem %s5, %s393
        %s395 = sadd.s32 %s30, %s31
        %p396 = scmp.lt.s32.totalorder %s395, 0
        %s397 = scalar_select %p396, %s395, 0
        %s398 = smul.u32 2, %s397
        %s399 = ssub.s32 1, %s398
        %s400 = smul.u32 64, %s399
        %p401 = scmp.eq.s32.totalorder %s31, 0
        // Predicated region
        $region49: #{tpu_custom_call.1} parent=43 // pred_check
          %p402 = pneg %p401
        $region50: #{tpu_custom_call.1} parent=43 // pred_check_branch
          %404 = sbr.rel (%p402) target = $region52
        $region51: #{tpu_custom_call.1} parent=43 // pred_region
          %s405 = scalar_lea.smem [#allocation2], 0
          %406 = sst [smem:[%s405]] 0.0
          %s407 = scalar_lea.smem [#allocation2], 1
          %408 = sst [smem:[%s407]] 0.0
        $region52: #{tpu_custom_call.1} parent=43 // pred_fallthru
          _
        %v409 = vld [vmem:[%s378] sm:$0xff]
        %v410 = vld [vmem:[%s394] sm:$0xff]
        %v411 = vld [vmem:[%s1] sm:$0x1]
        %v412 = vld [vmem:[%s2] sm:$0x1]
        %v413 = vld [vmem:[#allocation3] sm:$0xff]
        %v414 = vld [vmem:[#allocation3 + $0x8] sm:$0xff]
        %v415 = vld [vmem:[#allocation3 + $0x10] sm:$0xff]
        %v416 = vld [vmem:[#allocation3 + $0x18] sm:$0xff]
        %v417 = vld [vmem:[#allocation3 + $0x20] sm:$0xff]
        %v418 = vld [vmem:[#allocation3 + $0x28] sm:$0xff]
        %v419 = vld [vmem:[#allocation3 + $0x30] sm:$0xff]
        %v420 = vld [vmem:[#allocation3 + $0x38] sm:$0xff]
        %v421 = vld [vmem:[#allocation3 + $0x40] sm:$0xff]
        %v422 = vld [vmem:[#allocation3 + $0x48] sm:$0xff]
        %v423 = vld [vmem:[#allocation3 + $0x50] sm:$0xff]
        %v424 = vld [vmem:[#allocation3 + $0x58] sm:$0xff]
        %v425 = vld [vmem:[#allocation3 + $0x60] sm:$0xff]
        %v426 = vld [vmem:[#allocation3 + $0x68] sm:$0x7]
        %v427 = vld [vmem:[%s3] sm:$0x1]
        %vm428 = vcmp.gt.f32.partialorder %v412, 0.5
        %v429 = vsub.f32 %v409, %v410
        %v430 = vmul.f32 %v429, %v429
        %v432 = vlaneseq
        %v433 = vshrl.u32 %v432, 7
        %v434 = vsub.s32 0, %v433
        %v435 = vrot.slane %v411, %v434
        %v437 = vmul.f32 %v430, %v435
        %vm438 = vcmask 875520
        %v439 = vsel %vm438, %v437, 0.0
        %440 = vadd.xlane.f32.xlu0 %v439
        %v441 = vpop.xlane.xlu0 %440
        %v442 = vsel %vm428, 1, 0
        %v443 = vlaneseq
        %v444 = vshrl.u32 %v443, 7
        %v445 = vsub.s32 0, %v444
        %v446 = vrot.slane %v442, %v445
        %vm447 = vcmp.eq.s32.totalorder %v446, 1
        %v448 = vsel %vm447, %v409, -inf
        %v449 = vsel %vm438, %v448, -inf
        %450 = vmax.xlane.f32.xlu0 %v449
        %v451 = vpop.xlane.xlu0 %450
        %v452 = vsub.f32 %v448, %v451
        %v453 = vmul.f32 %v452, 1.442695
        %v454 = vpow.pop %v453
        %v456 = vlaneseq
        %v457 = vshrl.u32 %v456, 7
        %v458 = vsub.s32 0, %v457
        %v459 = vrot.slane %v427, %v458
        %v462 = vsel %vm438, %v454, 0
        %vm464 = vcmask 1042432
        %v466 = vsel %vm464, %v426, 0
        %468 = vmatprep.subr.mxu0 0.0
        %469 = vmatpush1.msra.mxu0 %v413
        %470 = vmatprep.subr.mxu0 0.0
        %471 = vmatpush1.msra.mxu0 %v414
        %472 = vmatprep.subr.mxu0 0.0
        %473 = vmatpush1.msra.mxu0 %v415
        %474 = vmatprep.subr.mxu0 0.0
        %475 = vmatpush1.msra.mxu0 %v416
        %476 = vmatprep.subr.mxu0 0.0
        %477 = vmatpush1.msra.mxu0 %v417
        %478 = vmatprep.subr.mxu0 0.0
        %479 = vmatpush1.msra.mxu0 %v418
        %480 = vmatprep.subr.mxu0 0.0
        %481 = vmatpush1.msra.mxu0 %v419
        %482 = vmatprep.subr.mxu0 0.0
        %483 = vmatpush1.msra.mxu0 %v420
        %484 = vmatprep.subr.mxu0 0.0
        %485 = vmatpush1.msra.mxu0 %v421
        %486 = vmatprep.subr.mxu0 0.0
        %487 = vmatpush1.msra.mxu0 %v422
        %488 = vmatprep.subr.mxu0 0.0
        %489 = vmatpush1.msra.mxu0 %v423
        %490 = vmatprep.subr.mxu0 0.0
        %491 = vmatpush1.msra.mxu0 %v424
        %492 = vmatprep.subr.mxu0 0.0
        %493 = vmatpush1.msra.mxu0 %v425
        %494 = vmatprep.subr.mxu0 0.0
        %495 = vmatpush1.msra.mxu0 %v466
        %496 = vmatprep.subr.mxu0 0.0
        %497 = vmatpush1.msra.mxu0 0.0
        %498 = vmatprep.subr.mxu0 0.0
        %499 = vmatpush1.msra.mxu0 0.0
        %500 = vmatprep.subr.mxu0 0.0
        %501 = vmatpush1.msra.mxu0 0.0
        %502 = vmatprep.subr.mxu0 0.0
        %503 = vmatpush1.msra.mxu0 0.0
        %504 = vmatprep.subr.mxu0 0.0
        %505 = vmatpush1.msra.mxu0 0.0
        %506 = vmatprep.subr.mxu0 0.0
        %507 = vmatpush1.msra.mxu0 0.0
        %508 = vmatprep.subr.mxu0 0.0
        %509 = vmatpush1.msra.mxu0 0.0
        %510 = vmatprep.subr.mxu0 0.0
        %511 = vmatpush1.msra.mxu0 0.0
        %512 = vmatprep.subr.mxu0 0.0
        %513 = vmatpush1.msra.mxu0 0.0
        %514 = vmatprep.subr.mxu0 0.0
        %515 = vmatpush1.msra.mxu0 0.0
        %516 = vmatprep.subr.mxu0 0.0
        %517 = vmatpush1.msra.mxu0 0.0
        %518 = vmatprep.subr.mxu0 0.0
        %519 = vmatpush1.msra.mxu0 0.0
        %520 = vmatprep.subr.mxu0 0.0
        %521 = vmatpush1.msra.mxu0 0.0
        %522 = vmatprep.subr.mxu0 0.0
        %523 = vmatpush1.msra.mxu0 0.0
        %524 = vmatprep.subr.mxu0 0.0
        %525 = vmatpush1.msra.mxu0 0.0
        %526 = vmatprep.subr.mxu0 0.0
        %527 = vmatpush1.msra.mxu0 0.0
        %528 = vmatprep.subr.mxu0 0.0
        %529 = vmatpush1.msra.mxu0 0.0
        %530 = vmatprep.subr.mxu0 0.0
        %531 = vmatpush1.msra.mxu0 0.0
        %532 = vmatprep.mubr.f32.mxu0 0.0
        %533 = vmatmul.mubr.f32.gmra.mrb[0].mxu0 %v462
        %v534 = vpop.f32.mrb[0].mxu0
        %v535 = vadd.f32 %v459, %v534
        %v536 = vpop.f32.mrb[0].mxu0
        %537 = vdwg.mxu0
        %v538 = vmul.f32 %v451, 8.0
        %v539 = vlog2.pop %v535
        %v540 = vmul.f32 %v539, 0.6931472
        %541 = vadd.xlane.f32.xlu0 %v540
        %v542 = vpop.xlane.xlu0 %541
        %v543 = vadd.f32 %v538, %v542
        %v544 = vmul.f32 %v409, %v410
        %v546 = vlaneseq
        %v547 = vshrl.u32 %v546, 7
        %v548 = vsub.s32 0, %v547
        %v549 = vrot.slane %v412, %v548
        %v551 = vmul.f32 %v544, %v549
        %v552 = vsel %vm438, %v551, 0.0
        %553 = vadd.xlane.f32.xlu0 %v552
        %v554 = vpop.xlane.xlu0 %553
        %v555 = vsub.f32 %v543, %v554
        %s556 = sadd.s32 %s30, %s31
        %s557 = smul.u32 %s556, 8
        %s558 = sadd.s32 %s557, 8
        %p559 = scmp.gt.s32.totalorder %s558, 4
        %p560 = scmp.le.s32.totalorder %s558, 4
        // Predicated region
        $region53: #{tpu_custom_call.1} parent=43 // pred_check
          %p561 = pneg %p560
        $region54: #{tpu_custom_call.1} parent=43 // pred_check_branch
          %563 = sbr.rel (%p561) target = $region56
        $region55: #{tpu_custom_call.1} parent=43 // pred_region
          %s564 = sld [smem:[#allocation2]]
          %vm565 = vcmask 7168
          %v566 = vsel %vm565, %v441, 0.0
          %567 = vadd.xlane.f32.xlu0 %v566
          %v568 = vpop.xlane.xlu0 %567
          %v569 = vrot.slane %v568, 4
          %v570 = vadd.f32 %v568, %v569
          %v571 = vrot.slane %v570, 2
          %v572 = vadd.f32 %v570, %v571
          %v573 = vrot.slane %v572, 1
          %v574 = vadd.f32 %v572, %v573
          %s575 = vtos %v574
          %s576 = sadd.f32 %s564, %s575
          %s577 = scalar_lea.smem [#allocation2], 0
          %578 = sst [smem:[%s577]] %s576
          %s579 = sld [smem:[#allocation2 + $0x1]]
          %v580 = vsel %vm565, %v555, 0.0
          %581 = vadd.xlane.f32.xlu0 %v580
          %v582 = vpop.xlane.xlu0 %581
          %v583 = vrot.slane %v582, 4
          %v584 = vadd.f32 %v582, %v583
          %v585 = vrot.slane %v584, 2
          %v586 = vadd.f32 %v584, %v585
          %v587 = vrot.slane %v586, 1
          %v588 = vadd.f32 %v586, %v587
          %s589 = vtos %v588
          %s590 = sadd.f32 %s579, %s589
          %s591 = scalar_lea.smem [#allocation2], 1
          %592 = sst [smem:[%s591]] %s590
        $region56: #{tpu_custom_call.1} parent=43 // pred_fallthru
          _
        // Predicated region
        $region57: #{tpu_custom_call.1} parent=43 // pred_check
          %p593 = pneg %p559
        $region58: #{tpu_custom_call.1} parent=43 // pred_check_branch
          %595 = sbr.rel (%p593) target = $region60
        $region59: #{tpu_custom_call.1} parent=43 // pred_region
          %v596 = vlaneseq
          %v597 = vshrl.u32 %v596, 7
          %v598 = vstv %s557
          %v599 = vadd.s32 %v597, %v598
          %vm600 = vcmp.lt.s32.totalorder %v599, 4
          %s601 = sld [smem:[#allocation2]]
          %v602 = vsel %vm600, %v441, 0.0
          %vm603 = vcmask 7168
          %v604 = vsel %vm603, %v602, 0.0
          %605 = vadd.xlane.f32.xlu0 %v604
          %v606 = vpop.xlane.xlu0 %605
          %v607 = vrot.slane %v606, 4
          %v608 = vadd.f32 %v606, %v607
          %v609 = vrot.slane %v608, 2
          %v610 = vadd.f32 %v608, %v609
          %v611 = vrot.slane %v610, 1
          %v612 = vadd.f32 %v610, %v611
          %s613 = vtos %v612
          %s614 = sadd.f32 %s601, %s613
          %s615 = scalar_lea.smem [#allocation2], 0
          %616 = sst [smem:[%s615]] %s614
          %s617 = sld [smem:[#allocation2 + $0x1]]
          %v618 = vsel %vm600, %v555, 0.0
          %v619 = vsel %vm603, %v618, 0.0
          %620 = vadd.xlane.f32.xlu0 %v619
          %v621 = vpop.xlane.xlu0 %620
          %v622 = vrot.slane %v621, 4
          %v623 = vadd.f32 %v621, %v622
          %v624 = vrot.slane %v623, 2
          %v625 = vadd.f32 %v623, %v624
          %v626 = vrot.slane %v625, 1
          %v627 = vadd.f32 %v625, %v626
          %s628 = vtos %v627
          %s629 = sadd.f32 %s617, %s628
          %s630 = scalar_lea.smem [#allocation2], 1
          %631 = sst [smem:[%s630]] %s629
        $region60: #{tpu_custom_call.1} parent=43 // pred_fallthru
          _
        // Predicated region
        $region61: #{tpu_custom_call.1} parent=43 // pred_check
          %p632 = pneg %p401
        $region62: #{tpu_custom_call.1} parent=43 // pred_check_branch
          %634 = sbr.rel (%p632) target = $region64
        $region63: #{tpu_custom_call.1} parent=43 // pred_region
          %s635 = sld [smem:[#allocation2]]
          %v636 = vstv %s635
          %637 = vst [vmem:[%s361] sm:$0xff] %v636
          %s638 = sld [smem:[#allocation2 + $0x1]]
          %v639 = vstv %s638
          %640 = vst [vmem:[%s368] sm:$0xff] %v639
        $region64: #{tpu_custom_call.1} parent=43 // pred_fallthru
          _
        %s641 = sand.u32 %s194, 1
        %s642 = scalar_lea.sflag [#allocation5], %s641
        %s643 = sand.u32 %s194, 1
        %s644 = smul.addr %s643, 8
        %s645 = scalar_lea.vmem [#allocation6], %s644
        %s646 = sand.u32 %s220, 1
        %s647 = scalar_lea.sflag [#allocation8], %s646
        %s648 = sand.u32 %s220, 1
        %s649 = smul.addr %s648, 8
        %s650 = scalar_lea.vmem [#allocation7], %s649
        // Predicated region
        $region65: #{tpu_custom_call.1} parent=43 // pred_check
          %p651 = pneg %p204
        $region66: #{tpu_custom_call.1} parent=43 // pred_check_branch
          %653 = sbr.rel (%p651) target = $region68
        $region67: #{tpu_custom_call.1} parent=43 // pred_region
          %s655 = ssub.s32 128, 128
          %656 = vsyncadd %s642, %s655
          %s657 = smul.addr %s30, 128
          %s658 = scalar_lea.hbm %s6, %s657
          %s660 = sshll.u32 %s645, 4
          %s661 = int_to_ptr.vmem [resolvable:$true] %s660
          %663 = dma.vmem_to_hbm [thread:$0]  %s661, 128, %s658, %s642
        $region68: #{tpu_custom_call.1} parent=43 // pred_fallthru
          _
        // Predicated region
        $region69: #{tpu_custom_call.1} parent=43 // pred_check
          %p664 = pneg %p230
        $region70: #{tpu_custom_call.1} parent=43 // pred_check_branch
          %666 = sbr.rel (%p664) target = $region72
        $region71: #{tpu_custom_call.1} parent=43 // pred_region
          %s668 = ssub.s32 128, 128
          %669 = vsyncadd %s647, %s668
          %s670 = smul.addr %s30, 128
          %s671 = scalar_lea.hbm %s7, %s670
          %s673 = sshll.u32 %s650, 4
          %s674 = int_to_ptr.vmem [resolvable:$true] %s673
          %676 = dma.vmem_to_hbm [thread:$0]  %s674, 128, %s671, %s647
        $region72: #{tpu_custom_call.1} parent=43 // pred_fallthru
          _
      $region44: #{tpu_custom_call.1} parent=5 // pred_fallthru
        _
      %p677 = scmp.le.s32.totalorder 2, %s21
      // Predicated region
      $region73: #{tpu_custom_call.1} parent=5 // pred_check
        %p678 = pneg %p677
      $region74: #{tpu_custom_call.1} parent=5 // pred_check_branch
        %680 = sbr.rel (%p678) target = $region76
      $region75: #{tpu_custom_call.1} parent=5 // pred_region
        %s681 = ssub.s32 %s21, 2
        // Predicated region
        $region77: #{tpu_custom_call.1} parent=75 // pred_check
          %p682 = pneg %p210
        $region78: #{tpu_custom_call.1} parent=75 // pred_check_branch
          %684 = sbr.rel (%p682) target = $region80
        $region79: #{tpu_custom_call.1} parent=75 // pred_region
          %s685 = sand.u32 %s195, 1
          %s686 = scalar_lea.sflag [#allocation5], %s685
          %s687 = sand.u32 %s195, 1
          %s688 = smul.addr %s687, 8
          %s689 = scalar_lea.vmem [#allocation6], %s688
          %690 = dma.done %s686, 128
        $region80: #{tpu_custom_call.1} parent=75 // pred_fallthru
          _
        // Predicated region
        $region81: #{tpu_custom_call.1} parent=75 // pred_check
          %p691 = pneg %p236
        $region82: #{tpu_custom_call.1} parent=75 // pred_check_branch
          %693 = sbr.rel (%p691) target = $region84
        $region83: #{tpu_custom_call.1} parent=75 // pred_region
          %s694 = sand.u32 %s221, 1
          %s695 = scalar_lea.sflag [#allocation8], %s694
          %s696 = sand.u32 %s221, 1
          %s697 = smul.addr %s696, 8
          %s698 = scalar_lea.vmem [#allocation7], %s697
          %699 = dma.done %s695, 128
        $region84: #{tpu_custom_call.1} parent=75 // pred_fallthru
          _
      $region76: #{tpu_custom_call.1} parent=5 // pred_fallthru
        _
    $region6: #{tpu_custom_call.1} parent=1 // loop_footer
      %s25 = sadd.s32 1, %s21
    $region7: #{tpu_custom_call.1} parent=1 // loop_footer_branch
      %20 = sbr.rel target = $region3
    $region8: #{tpu_custom_call.1} parent=1 // loop_exit
      _
    %700 = vsyncpa [#allocation4], 1
    %s701 = scalar_lea.sflag [#allocation4], 1
    %702 = vsyncpa %s701, 1
    %703 = vsyncpa [#allocation5], 1
    %s704 = scalar_lea.sflag [#allocation5], 1
    %705 = vsyncpa %s704, 1
    %706 = vsyncpa [#allocation8], 1
    %s707 = scalar_lea.sflag [#allocation8], 1
    %708 = vsyncpa %s707, 1

</llo_original>
